<compile_context>
chip_gen: v5e
topology: v5e:2x2
jax: 0.10.0
libtpu: 0.0.40
codegen_flags: <defaults>
</compile_context>

<pallas_src>
import functools

import jax
import jax.numpy as jnp
from jax.experimental import pallas as pl
from jax.experimental.pallas import tpu as pltpu  # noqa: F401  (TPU backend)

# ----------------------------- configuration --------------------------------
B, C_IN, H, W = 2, 3, 32, 32           # batch of small NCHW images
PATCH = 4                              # backbone.patch_size
HP, WP = H // PATCH, W // PATCH        # patch-token spatial grid (8 x 8)
D = 32                                 # ViT embedding dim
P = 7                                  # roialign_size (cfg POOLER_RESOLUTION)
NUM_ROIS = 6
LABEL_NAMES = ['date', 'fig', 'hazelnut']
N_CLS = len(LABEL_NAMES)
K_PROTO = 4                            # prototypes per class (3-D prototype case)
K_IN = C_IN * PATCH * PATCH            # 48 (multiple of 8 -> aligned LHS/RHS tiles)
M_TOK = B * HP * WP                    # 128 (lane-dense token axis)
# sampling_ratio=-1 -> ceil(bin_size) samples/bin; for boxes inside the image
# bin_size <= max(HP, WP)/P, so this bound is exact (no silent clamping).
S_MAX = max(1, -(-max(HP, WP) // P))

PIXEL_MEAN = jnp.array([103.53, 116.28, 123.675], dtype=jnp.float32)
PIXEL_STD = jnp.array([57.375, 57.12, 58.395], dtype=jnp.float32)


# ------------------------------ fused kernel ---------------------------------
def _fused_kernel(patches_ref, w_ref, b_ref, wroi_ref, proto_ref,
                  tok_ref, roi_ref, cw_ref):
    # patch embed with folded pixel-normalization; bias as a VPU broadcast add:
    #   tok[d, m] = sum_k w[d, k] * patches[k, m] + b[d]      -> [D, B*HP*WP]
    tok = jnp.dot(w_ref[...], patches_ref[...], preferred_element_type=jnp.float32)
    tok = tok + b_ref[...]                     # [D, 1] broadcast over lanes
    tok_ref[...] = tok

    # ROIAlign over ALL ROIs as one lane-dense matmul (N padded to a multiple
    # of 128; per-ROI batch-index gather baked into wroi as zeroed columns):
    roi_ref[...] = jnp.dot(tok, wroi_ref[...], preferred_element_type=jnp.float32)

    # class prototypes: mean over K prototypes (rows are prototype-major,
    # row = k*N_CLS + l), then L2 normalize with clamp_min(norm, 1e-12).
    m = proto_ref[pl.ds(0, N_CLS), :]
    for k in range(1, K_PROTO):
        m = m + proto_ref[pl.ds(k * N_CLS, N_CLS), :]
    m = m * (1.0 / K_PROTO)
    norm = jnp.sqrt(jnp.sum(m * m, axis=-1, keepdims=True))
    cw_ref[...] = m / jnp.maximum(norm, 1e-12)


# ----------------------- one-time (init) constant prep -----------------------
def _fold_pixel_norm(patch_w, patch_b):
    """Fold (x - mean)/std into the patch-embed linear layer (exact)."""
    std_row = jnp.repeat(PIXEL_STD, PATCH * PATCH)     # [K_IN]
    mean_row = jnp.repeat(PIXEL_MEAN, PATCH * PATCH)   # [K_IN]
    w_fold = patch_w / std_row[:, None]                # [K_IN, D]
    b_fold = patch_b - (mean_row / std_row) @ patch_w  # [D]
    return w_fold, b_fold


def init_constants(patch_w, patch_b, prototypes):
    """Hoisted out of the per-call path: weight folding, transpose, and the
    prototype-major 2-D prototype layout are computed exactly once."""
    w_fold, b_fold = _fold_pixel_norm(patch_w, patch_b)
    w_t = jnp.asarray(w_fold.T)                               # [D, K_IN]
    b_col = jnp.asarray(b_fold.reshape(D, 1))                 # [D, 1]
    proto2d = jnp.asarray(
        prototypes.transpose(1, 0, 2).reshape(K_PROTO * prototypes.shape[0], D))
    return w_t, b_col, proto2d


# ----------------------- ROIAlign interpolation weights ----------------------
def _interp_matrix(starts, sizes, pooled, dim_size, max_samples):
    """Per-ROI 1-D bilinear interpolation matrix, detectron2 ROIAlign
    aligned=True, sampling_ratio=-1 (adaptive ceil(bin_size) samples/bin,
    masked up to max_samples).  Returns [R, pooled, dim_size]."""
    bin_size = sizes / pooled                                   # [R]
    n = jnp.clip(jnp.ceil(bin_size), 1.0, float(max_samples))   # samples/bin per ROI
    p = jnp.arange(pooled, dtype=jnp.float32)[None, :, None]
    s = jnp.arange(max_samples, dtype=jnp.float32)[None, None, :]
    nr = n[:, None, None]
    sample_on = (s < nr).astype(jnp.float32)
    pos = starts[:, None, None] + bin_size[:, None, None] * (p + (s + 0.5) / nr)
    in_range = ((pos >= -1.0) & (pos <= float(dim_size))).astype(jnp.float32)
    pos_c = jnp.clip(pos, 0.0, float(dim_size - 1))
    low = jnp.floor(pos_c)
    frac = pos_c - low
    low_i = low.astype(jnp.int32)
    high_i = jnp.minimum(low_i + 1, dim_size - 1)
    oh_low = jax.nn.one_hot(low_i, dim_size, dtype=jnp.float32)
    oh_high = jax.nn.one_hot(high_i, dim_size, dtype=jnp.float32)
    wgt = (((1.0 - frac) * in_range * sample_on)[..., None] * oh_low
           + (frac * in_range * sample_on)[..., None] * oh_high)
    return wgt.sum(axis=2) / nr                                  # [R, pooled, dim_size]


def _roi_interp_weights(rois, spatial_scale):
    """Combined (wy (x) wx (x) batch-onehot) ROIAlign matrix: [B*HP*WP, R*P*P]."""
    r = rois.shape[0]
    batch_idx = rois[:, 0].astype(jnp.int32)
    boxes = rois[:, 1:] * spatial_scale
    x1 = boxes[:, 0] - 0.5          # aligned=True offset
    y1 = boxes[:, 1] - 0.5
    x2 = boxes[:, 2] - 0.5
    y2 = boxes[:, 3] - 0.5
    wy = _interp_matrix(y1, y2 - y1, P, HP, S_MAX)               # [R, P, HP]
    wx = _interp_matrix(x1, x2 - x1, P, WP, S_MAX)               # [R, P, WP]
    wcomb = jnp.einsum('rph,rqw->rpqhw', wy, wx).reshape(r, P * P, HP * WP)
    bsel = jax.nn.one_hot(batch_idx, B, dtype=jnp.float32)       # [R, B]
    wfull = jnp.einsum('rnk,rb->rnbk', wcomb, bsel)              # [R, P*P, B, HP*WP]
    wfull = wfull.reshape(r * P * P, B * HP * WP)
    return wfull.T                                               # [B*HP*WP, R*P*P]


# ---------------------------------- driver -----------------------------------
@functools.partial(jax.jit, static_argnames=("training",))
def devitnet_forward(images, rois, w_t, b_col, proto2d, training=False):
    b = images.shape[0]
    r = rois.shape[0]
    n_roi = r * P * P
    n_roi_pad = ((n_roi + 127) // 128) * 128        # lane-dense ROI output width
    m_tok = b * HP * WP

    # raw image patches (pixel normalization is folded into the weights)
    patches = images.reshape(b, C_IN, HP, PATCH, WP, PATCH)
    patches = patches.transpose(0, 2, 4, 1, 3, 5).reshape(m_tok, K_IN).T   # [K_IN, M]

    wroi = _roi_interp_weights(rois, 1.0 / PATCH)                           # [M, R*P*P]
    wroi = jnp.pad(wroi, ((0, 0), (0, n_roi_pad - n_roi)))                  # [M, n_roi_pad]

    flops = 2 * D * K_IN * m_tok + 2 * D * m_tok * n_roi_pad
    bytes_accessed = 4 * (patches.size + w_t.size + b_col.size + wroi.size
                          + proto2d.size + D * m_tok + D * n_roi_pad + N_CLS * D)

    tok_t, roi_t, class_weights_all = pl.pallas_call(
        _fused_kernel,
        out_shape=(
            jax.ShapeDtypeStruct((D, m_tok), jnp.float32),
            jax.ShapeDtypeStruct((D, n_roi_pad), jnp.float32),
            jax.ShapeDtypeStruct((N_CLS, D), jnp.float32),
        ),
        in_specs=[
            pl.BlockSpec(patches.shape, lambda: (0, 0)),
            pl.BlockSpec(w_t.shape, lambda: (0, 0)),
            pl.BlockSpec(b_col.shape, lambda: (0, 0)),
            pl.BlockSpec(wroi.shape, lambda: (0, 0)),
            pl.BlockSpec(proto2d.shape, lambda: (0, 0)),
        ],
        out_specs=(
            pl.BlockSpec((D, m_tok), lambda: (0, 0)),
            pl.BlockSpec((D, n_roi_pad), lambda: (0, 0)),
            pl.BlockSpec((N_CLS, D), lambda: (0, 0)),
        ),
        cost_estimate=pl.CostEstimate(
            flops=flops, transcendentals=N_CLS, bytes_accessed=bytes_accessed),
    )(patches, w_t, b_col, wroi, proto2d)

    # Layout plumbing back to the module's NCHW conventions; consumers that can
    # accept the lane-dense [D, *] slabs should use tok_t / roi_t directly.
    patch_tokens = tok_t.reshape(D, b, HP, WP).transpose(1, 0, 2, 3)        # [B, D, HP, WP]
    roi_features = roi_t[:, :n_roi].reshape(D, r, P, P).transpose(1, 0, 2, 3)  # [R, D, P, P]

    order = ([LABEL_NAMES.index(c) for c in ['fig', 'hazelnut']] if training
             else [LABEL_NAMES.index(c) for c in ['date', 'fig', 'hazelnut']])
    class_weights = class_weights_all[jnp.array(order, jnp.int32)]

    # TODO(synk): proposal_generator / roi_heads losses and prepare_noisy_boxes are
    # external detectron2 modules; not reimplemented here.
    return roi_features, class_weights, patch_tokens


if __name__ == "__main__":
    key = jax.random.PRNGKey(0)
    k_img, k_w, k_b, k_proto, k_box = jax.random.split(key, 5)

    images = jax.random.uniform(k_img, (B, C_IN, H, W), jnp.float32, 0.0, 255.0)
    patch_w = jax.random.normal(k_w, (K_IN, D), jnp.float32) * 0.02
    patch_b = jax.random.normal(k_b, (D,), jnp.float32) * 0.01
    prototypes = jax.random.normal(k_proto, (N_CLS, K_PROTO, D), jnp.float32)

    # deterministic rois: (batch_idx, x1, y1, x2, y2) in image coordinates
    coords = jax.random.uniform(k_box, (NUM_ROIS, 4), jnp.float32, 0.0, float(H))
    x_lo = jnp.minimum(coords[:, 0], coords[:, 2])
    x_hi = jnp.maximum(coords[:, 0], coords[:, 2]) + 2.0
    y_lo = jnp.minimum(coords[:, 1], coords[:, 3])
    y_hi = jnp.maximum(coords[:, 1], coords[:, 3]) + 2.0
    batch_ids = (jnp.arange(NUM_ROIS) % B).astype(jnp.float32)
    rois = jnp.stack([batch_ids, x_lo, y_lo, x_hi, y_hi], axis=1)

    # one-time constant prep (hoisted out of the per-call path)
    w_t, b_col, proto2d = init_constants(patch_w, patch_b, prototypes)

    roi_features, class_weights, patch_tokens = devitnet_forward(
        images, rois, w_t, b_col, proto2d, training=False
    )
    jax.block_until_ready((roi_features, class_weights, patch_tokens))

    assert roi_features.shape == (NUM_ROIS, D, P, P)
    assert class_weights.shape == (N_CLS, D)
    assert patch_tokens.shape == (B, D, HP, WP)
    print("KERNEL_OK")
</pallas_src>

<mosaic_0001>
module attributes {stable_mosaic.version = 11 : i64} {
  func.func @_fused_kernel(%arg0: memref<48x128xf32, #tpu.memory_space<vmem>>, %arg1: memref<32x48xf32, #tpu.memory_space<vmem>>, %arg2: memref<32x1xf32, #tpu.memory_space<vmem>>, %arg3: memref<128x384xf32, #tpu.memory_space<vmem>>, %arg4: memref<12x32xf32, #tpu.memory_space<vmem>>, %arg5: memref<32x128xf32, #tpu.memory_space<vmem>>, %arg6: memref<32x384xf32, #tpu.memory_space<vmem>>, %arg7: memref<3x32xf32, #tpu.memory_space<vmem>>) attributes {dimension_semantics = [], scalar_prefetch = 0 : i64, scratch_operands = 0 : i64, tpu.core_type = #tpu.core_type<tc>} {
    %c0 = arith.constant 0 : index
    %c0_0 = arith.constant 0 : index
    %0 = vector.load %arg1[%c0, %c0_0] : memref<32x48xf32, #tpu.memory_space<vmem>>, vector<32x48xf32>
    %c0_1 = arith.constant 0 : index
    %c0_2 = arith.constant 0 : index
    %1 = vector.load %arg0[%c0_1, %c0_2] : memref<48x128xf32, #tpu.memory_space<vmem>>, vector<48x128xf32>
    %cst = arith.constant dense<0.000000e+00> : vector<32x128xf32>
    %2 = tpu.matmul %0, %1, %cst {dimension_numbers = #tpu.dot_dimension_numbers<[1], [0], [0], [1], [0, 0, 1, 1], [], []>} : vector<32x48xf32>, vector<48x128xf32>, vector<32x128xf32> -> vector<32x128xf32>
    %c0_3 = arith.constant 0 : index
    %c0_4 = arith.constant 0 : index
    %3 = vector.load %arg2[%c0_3, %c0_4] : memref<32x1xf32, #tpu.memory_space<vmem>>, vector<32x1xf32>
    %4 = vector.broadcast %3 : vector<32x1xf32> to vector<32x128xf32>
    %5 = arith.addf %2, %4 : vector<32x128xf32>
    %c0_5 = arith.constant 0 : index
    %c0_6 = arith.constant 0 : index
    %6 = vector.load %arg5[%c0_5, %c0_6] : memref<32x128xf32, #tpu.memory_space<vmem>>, vector<32x128xf32>
    tpu.vector_store %arg5[%c0_5, %c0_6], %5 {strides = array<i32>} : memref<32x128xf32, #tpu.memory_space<vmem>>, vector<32x128xf32>,
    %c0_7 = arith.constant 0 : index
    %c0_8 = arith.constant 0 : index
    %7 = vector.load %arg3[%c0_7, %c0_8] : memref<128x384xf32, #tpu.memory_space<vmem>>, vector<128x384xf32>
    %cst_9 = arith.constant dense<0.000000e+00> : vector<32x384xf32>
    %8 = tpu.matmul %5, %7, %cst_9 {dimension_numbers = #tpu.dot_dimension_numbers<[1], [0], [0], [1], [0, 0, 1, 1], [], []>} : vector<32x128xf32>, vector<128x384xf32>, vector<32x384xf32> -> vector<32x384xf32>
    %c0_10 = arith.constant 0 : index
    %c0_11 = arith.constant 0 : index
    %9 = vector.load %arg6[%c0_10, %c0_11] : memref<32x384xf32, #tpu.memory_space<vmem>>, vector<32x384xf32>
    tpu.vector_store %arg6[%c0_10, %c0_11], %8 {strides = array<i32>} : memref<32x384xf32, #tpu.memory_space<vmem>>, vector<32x384xf32>,
    %c0_12 = arith.constant 0 : index
    %c0_13 = arith.constant 0 : index
    %10 = vector.load %arg4[%c0_12, %c0_13] : memref<12x32xf32, #tpu.memory_space<vmem>>, vector<3x32xf32>
    %c3 = arith.constant 3 : index
    %c0_14 = arith.constant 0 : index
    %11 = vector.load %arg4[%c3, %c0_14] : memref<12x32xf32, #tpu.memory_space<vmem>>, vector<3x32xf32>
    %12 = arith.addf %10, %11 : vector<3x32xf32>
    %c6 = arith.constant 6 : index
    %c0_15 = arith.constant 0 : index
    %13 = vector.load %arg4[%c6, %c0_15] : memref<12x32xf32, #tpu.memory_space<vmem>>, vector<3x32xf32>
    %14 = arith.addf %12, %13 : vector<3x32xf32>
    %c9 = arith.constant 9 : index
    %c0_16 = arith.constant 0 : index
    %15 = vector.load %arg4[%c9, %c0_16] : memref<12x32xf32, #tpu.memory_space<vmem>>, vector<3x32xf32>
    %16 = arith.addf %14, %15 : vector<3x32xf32>
    %cst_17 = arith.constant 2.500000e-01 : f32
    %17 = vector.broadcast %cst_17 : f32 to vector<3x32xf32>
    %18 = arith.mulf %16, %17 : vector<3x32xf32>
    %19 = arith.mulf %18, %18 : vector<3x32xf32>
    %cst_18 = arith.constant dense<0.000000e+00> : vector<3xf32>
    %20 = vector.multi_reduction <add>, %19, %cst_18 [1] : vector<3x32xf32> to vector<3xf32>
    %21 = vector.shape_cast %20 : vector<3xf32> to vector<3x1xf32>
    %22 = math.sqrt %21 : vector<3x1xf32>
    %cst_19 = arith.constant 9.99999996E-13 : f32
    %23 = vector.broadcast %cst_19 : f32 to vector<3x1xf32>
    %24 = arith.maximumf %22, %23 : vector<3x1xf32>
    %25 = vector.broadcast %24 : vector<3x1xf32> to vector<3x32xf32>
    %26 = arith.divf %18, %25 : vector<3x32xf32>
    %c0_20 = arith.constant 0 : index
    %c0_21 = arith.constant 0 : index
    %27 = vector.load %arg7[%c0_20, %c0_21] : memref<3x32xf32, #tpu.memory_space<vmem>>, vector<3x32xf32>
    tpu.vector_store %arg7[%c0_20, %c0_21], %26 {strides = array<i32>} : memref<3x32xf32, #tpu.memory_space<vmem>>, vector<3x32xf32>,
    return
  }
}

</mosaic_0001>

<llo_original>
// kernel: devitnet_forward.1
$region0: #{devitnet_forward.1}
  #allocation0 [shape = 'u32[]', space=smem, size = 0x4, offset = 0x4, fixed_abs, tag = 'smem constant byte address 0x4 - core index']
  #allocation1 [shape = 'u32[72,128]{1,0:T(1,128)}', space=vmem, size = 0x9000, scoped, tag = 'internal scratch']
  %s0 = inlined_call_operand.vmem [shape: f32[48,128], index: 0, kind: input, shape index: {}]
  %s1 = inlined_call_operand.vmem [shape: f32[32,48], index: 1, kind: input, shape index: {}]
  %s2 = inlined_call_operand.vmem [shape: f32[32,1], index: 2, kind: input, shape index: {}]
  %s3 = inlined_call_operand.vmem [shape: f32[128,384], index: 3, kind: input, shape index: {}]
  %s4 = inlined_call_operand.vmem [shape: f32[12,32], index: 4, kind: input, shape index: {}]
  %s5 = inlined_call_operand.vmem [shape: f32[32,128], index: 5, kind: output, shape index: {0}]
  %s6 = inlined_call_operand.vmem [shape: f32[32,384], index: 6, kind: output, shape index: {1}]
  %s7 = inlined_call_operand.vmem [shape: f32[3,32], index: 7, kind: output, shape index: {2}]
  %8 = xla_tuple %s5, %s6, %s7
  %s9 = sld [smem:[#allocation0]]
  $region46: #{devitnet_forward.1} parent=0
    _
  %s11 = ssub.s32 1, %s9
  %s12 = scalar_select 0, %s11, %s9
  // Predicated region
  $region2: #{devitnet_forward.1} parent=0 // pred_check
    _
  $region3: #{devitnet_forward.1} parent=0 // pred_check_branch
    %14 = sbr.rel (0) target = $region5
  $region4: #{devitnet_forward.1} parent=0 // pred_region
    _
  $region5: #{devitnet_forward.1} parent=0 // pred_fallthru
    _
  // Predicated region
  $region6: #{devitnet_forward.1} parent=0 // pred_check
    _
  $region7: #{devitnet_forward.1} parent=0 // pred_check_branch
    %16 = sbr.rel (0) target = $region9
  $region8: #{devitnet_forward.1} parent=0 // pred_region
    _
  $region9: #{devitnet_forward.1} parent=0 // pred_fallthru
    _
  // Predicated region
  $region10: #{devitnet_forward.1} parent=0 // pred_check
    _
  $region11: #{devitnet_forward.1} parent=0 // pred_check_branch
    %18 = sbr.rel (0) target = $region13
  $region12: #{devitnet_forward.1} parent=0 // pred_region
    _
  $region13: #{devitnet_forward.1} parent=0 // pred_fallthru
    _
  // Predicated region
  $region14: #{devitnet_forward.1} parent=0 // pred_check
    _
  $region15: #{devitnet_forward.1} parent=0 // pred_check_branch
    %20 = sbr.rel (0) target = $region17
  $region16: #{devitnet_forward.1} parent=0 // pred_region
    _
  $region17: #{devitnet_forward.1} parent=0 // pred_fallthru
    _
  // Predicated region
  $region18: #{devitnet_forward.1} parent=0 // pred_check
    _
  $region19: #{devitnet_forward.1} parent=0 // pred_check_branch
    %22 = sbr.rel (0) target = $region21
  $region20: #{devitnet_forward.1} parent=0 // pred_region
    _
  $region21: #{devitnet_forward.1} parent=0 // pred_fallthru
    _
  %v23 = vld [vmem:[%s1] sm:$0xff]
  %v24 = vld [vmem:[%s1 + $0x8] sm:$0xff]
  %v25 = vld [vmem:[%s1 + $0x10] sm:$0xff]
  %v26 = vld [vmem:[%s1 + $0x18] sm:$0xff]
  %v27 = vld [vmem:[%s0] sm:$0xff]
  %v28 = vld [vmem:[%s0 + $0x8] sm:$0xff]
  %v29 = vld [vmem:[%s0 + $0x10] sm:$0xff]
  %v30 = vld [vmem:[%s0 + $0x18] sm:$0xff]
  %v31 = vld [vmem:[%s0 + $0x20] sm:$0xff]
  %v32 = vld [vmem:[%s0 + $0x28] sm:$0xff]
  %v33 = vld [vmem:[%s2] sm:$0xff]
  %v34 = vld [vmem:[%s2 + $0x8] sm:$0xff]
  %v35 = vld [vmem:[%s2 + $0x10] sm:$0xff]
  %v36 = vld [vmem:[%s2 + $0x18] sm:$0xff]
  %38 = vset.pattern.permute.xlu0 0
  %39 = vperm.xlu0 %38, %v33
  %v40 = vpop.permute.xlu0 %39
  %43 = vset.pattern.permute.xlu0 0
  %44 = vperm.xlu0 %43, %v34
  %v45 = vpop.permute.xlu0 %44
  %48 = vset.pattern.permute.xlu0 0
  %49 = vperm.xlu0 %48, %v35
  %v50 = vpop.permute.xlu0 %49
  %53 = vset.pattern.permute.xlu0 0
  %54 = vperm.xlu0 %53, %v36
  %v55 = vpop.permute.xlu0 %54
  %vm57 = vcmask 392192
  %v59 = vsel %vm57, %v23, 0
  %v62 = vsel %vm57, %v24, 0
  %v65 = vsel %vm57, %v25, 0
  %v68 = vsel %vm57, %v26, 0
  %70 = vmatpush.msra.mxu0 0.0
  %71 = vmatpush.msra.mxu0 0.0
  %72 = vmatpush.msra.mxu0 0.0
  %73 = vmatpush.msra.mxu0 0.0
  %74 = vmatpush.msra.mxu0 0.0
  %75 = vmatpush.msra.mxu0 0.0
  %76 = vmatpush.msra.mxu0 0.0
  %77 = vmatpush.msra.mxu0 0.0
  %78 = vmatpush.msra.mxu0 0.0
  %79 = vmatpush.msra.mxu0 0.0
  %80 = vmatpush.msra.mxu0 %v32
  %81 = vmatpush.msra.mxu0 %v31
  %82 = vmatpush.msra.mxu0 %v30
  %83 = vmatpush.msra.mxu0 %v29
  %84 = vmatpush.msra.mxu0 %v28
  %85 = vmatpush.msra.mxu0 %v27
  %86 = vmatmul.f32.gmra.mxu0 %v59
  %v87 = vpop.f32.mrf.mxu0
  %v88 = vadd.f32 %v40, %v87
  %89 = vmatmul.f32.gmra.mxu0 %v62
  %v90 = vpop.f32.mrf.mxu0
  %v91 = vadd.f32 %v45, %v90
  %92 = vmatmul.f32.gmra.mxu0 %v65
  %v93 = vpop.f32.mrf.mxu0
  %v94 = vadd.f32 %v50, %v93
  %95 = vmatmul.f32.gmra.mxu0 %v68
  %v96 = vpop.f32.mrf.mxu0
  %v97 = vadd.f32 %v55, %v96
  %98 = vdwg.mxu0
  %99 = vst [vmem:[%s5] sm:$0xff] %v88
  %100 = vst [vmem:[%s5 + $0x8] sm:$0xff] %v91
  %101 = vst [vmem:[%s5 + $0x10] sm:$0xff] %v94
  %102 = vst [vmem:[%s5 + $0x18] sm:$0xff] %v97
  %v103 = vld [vmem:[%s3] sm:$0xff]
  %v104 = vld [vmem:[%s3 + $0x8] sm:$0xff]
  %v105 = vld [vmem:[%s3 + $0x10] sm:$0xff]
  %v106 = vld [vmem:[%s3 + $0x18] sm:$0xff]
  %v107 = vld [vmem:[%s3 + $0x20] sm:$0xff]
  %v108 = vld [vmem:[%s3 + $0x28] sm:$0xff]
  %v109 = vld [vmem:[%s3 + $0x30] sm:$0xff]
  %v110 = vld [vmem:[%s3 + $0x38] sm:$0xff]
  %v111 = vld [vmem:[%s3 + $0x40] sm:$0xff]
  %v112 = vld [vmem:[%s3 + $0x48] sm:$0xff]
  %v113 = vld [vmem:[%s3 + $0x50] sm:$0xff]
  %v114 = vld [vmem:[%s3 + $0x58] sm:$0xff]
  %v115 = vld [vmem:[%s3 + $0x60] sm:$0xff]
  %v116 = vld [vmem:[%s3 + $0x68] sm:$0xff]
  %v117 = vld [vmem:[%s3 + $0x70] sm:$0xff]
  %v118 = vld [vmem:[%s3 + $0x78] sm:$0xff]
  %v119 = vld [vmem:[%s3 + $0x80] sm:$0xff]
  %v120 = vld [vmem:[%s3 + $0x88] sm:$0xff]
  %v121 = vld [vmem:[%s3 + $0x90] sm:$0xff]
  %v122 = vld [vmem:[%s3 + $0x98] sm:$0xff]
  %v123 = vld [vmem:[%s3 + $0xa0] sm:$0xff]
  %v124 = vld [vmem:[%s3 + $0xa8] sm:$0xff]
  %v125 = vld [vmem:[%s3 + $0xb0] sm:$0xff]
  %v126 = vld [vmem:[%s3 + $0xb8] sm:$0xff]
  %v127 = vld [vmem:[%s3 + $0xc0] sm:$0xff]
  %v128 = vld [vmem:[%s3 + $0xc8] sm:$0xff]
  %v129 = vld [vmem:[%s3 + $0xd0] sm:$0xff]
  %v130 = vld [vmem:[%s3 + $0xd8] sm:$0xff]
  %v131 = vld [vmem:[%s3 + $0xe0] sm:$0xff]
  %v132 = vld [vmem:[%s3 + $0xe8] sm:$0xff]
  %v133 = vld [vmem:[%s3 + $0xf0] sm:$0xff]
  %v134 = vld [vmem:[%s3 + $0xf8] sm:$0xff]
  %v135 = vld [vmem:[%s3 + $0x100] sm:$0xff]
  %v136 = vld [vmem:[%s3 + $0x108] sm:$0xff]
  %v137 = vld [vmem:[%s3 + $0x110] sm:$0xff]
  %v138 = vld [vmem:[%s3 + $0x118] sm:$0xff]
  %v139 = vld [vmem:[%s3 + $0x120] sm:$0xff]
  %v140 = vld [vmem:[%s3 + $0x128] sm:$0xff]
  %v141 = vld [vmem:[%s3 + $0x130] sm:$0xff]
  %v142 = vld [vmem:[%s3 + $0x138] sm:$0xff]
  %v143 = vld [vmem:[%s3 + $0x140] sm:$0xff]
  %v144 = vld [vmem:[%s3 + $0x148] sm:$0xff]
  %v145 = vld [vmem:[%s3 + $0x150] sm:$0xff]
  %v146 = vld [vmem:[%s3 + $0x158] sm:$0xff]
  %v147 = vld [vmem:[%s3 + $0x160] sm:$0xff]
  %v148 = vld [vmem:[%s3 + $0x168] sm:$0xff]
  %v149 = vld [vmem:[%s3 + $0x170] sm:$0xff]
  %v150 = vld [vmem:[%s3 + $0x178] sm:$0xff]
  %151 = vmatpush.msra.mxu0 %v148
  %152 = vmatpush.msra.mxu0 %v145
  %153 = vmatpush.msra.mxu0 %v142
  %154 = vmatpush.msra.mxu0 %v139
  %155 = vmatpush.msra.mxu0 %v136
  %156 = vmatpush.msra.mxu0 %v133
  %157 = vmatpush.msra.mxu0 %v130
  %158 = vmatpush.msra.mxu0 %v127
  %159 = vmatpush.msra.mxu0 %v124
  %160 = vmatpush.msra.mxu0 %v121
  %161 = vmatpush.msra.mxu0 %v118
  %162 = vmatpush.msra.mxu0 %v115
  %163 = vmatpush.msra.mxu0 %v112
  %164 = vmatpush.msra.mxu0 %v109
  %165 = vmatpush.msra.mxu0 %v106
  %166 = vmatpush.msra.mxu0 %v103
  %167 = vmatmul.f32.gmra.mxu0 %v88
  %v168 = vpop.f32.mrf.mxu0
  %v169 = vadd.f32 0.0, %v168
  %170 = vmatmul.f32.gmra.mxu0 %v91
  %v171 = vpop.f32.mrf.mxu0
  %v172 = vadd.f32 0.0, %v171
  %173 = vmatmul.f32.gmra.mxu0 %v94
  %v174 = vpop.f32.mrf.mxu0
  %v175 = vadd.f32 0.0, %v174
  %176 = vmatmul.f32.gmra.mxu0 %v97
  %v177 = vpop.f32.mrf.mxu0
  %v178 = vadd.f32 0.0, %v177
  %179 = vdwg.mxu0
  %180 = vmatpush.msra.mxu0 %v149
  %181 = vmatpush.msra.mxu0 %v146
  %182 = vmatpush.msra.mxu0 %v143
  %183 = vmatpush.msra.mxu0 %v140
  %184 = vmatpush.msra.mxu0 %v137
  %185 = vmatpush.msra.mxu0 %v134
  %186 = vmatpush.msra.mxu0 %v131
  %187 = vmatpush.msra.mxu0 %v128
  %188 = vmatpush.msra.mxu0 %v125
  %189 = vmatpush.msra.mxu0 %v122
  %190 = vmatpush.msra.mxu0 %v119
  %191 = vmatpush.msra.mxu0 %v116
  %192 = vmatpush.msra.mxu0 %v113
  %193 = vmatpush.msra.mxu0 %v110
  %194 = vmatpush.msra.mxu0 %v107
  %195 = vmatpush.msra.mxu0 %v104
  %196 = vmatmul.f32.gmra.mxu0 %v88
  %v197 = vpop.f32.mrf.mxu0
  %v198 = vadd.f32 0.0, %v197
  %199 = vmatmul.f32.gmra.mxu0 %v91
  %v200 = vpop.f32.mrf.mxu0
  %v201 = vadd.f32 0.0, %v200
  %202 = vmatmul.f32.gmra.mxu0 %v94
  %v203 = vpop.f32.mrf.mxu0
  %v204 = vadd.f32 0.0, %v203
  %205 = vmatmul.f32.gmra.mxu0 %v97
  %v206 = vpop.f32.mrf.mxu0
  %v207 = vadd.f32 0.0, %v206
  %208 = vdwg.mxu0
  %209 = vmatpush.msra.mxu0 %v150
  %210 = vmatpush.msra.mxu0 %v147
  %211 = vmatpush.msra.mxu0 %v144
  %212 = vmatpush.msra.mxu0 %v141
  %213 = vmatpush.msra.mxu0 %v138
  %214 = vmatpush.msra.mxu0 %v135
  %215 = vmatpush.msra.mxu0 %v132
  %216 = vmatpush.msra.mxu0 %v129
  %217 = vmatpush.msra.mxu0 %v126
  %218 = vmatpush.msra.mxu0 %v123
  %219 = vmatpush.msra.mxu0 %v120
  %220 = vmatpush.msra.mxu0 %v117
  %221 = vmatpush.msra.mxu0 %v114
  %222 = vmatpush.msra.mxu0 %v111
  %223 = vmatpush.msra.mxu0 %v108
  %224 = vmatpush.msra.mxu0 %v105
  %225 = vmatmul.f32.gmra.mxu0 %v88
  %v226 = vpop.f32.mrf.mxu0
  %v227 = vadd.f32 0.0, %v226
  %228 = vmatmul.f32.gmra.mxu0 %v91
  %v229 = vpop.f32.mrf.mxu0
  %v230 = vadd.f32 0.0, %v229
  %231 = vmatmul.f32.gmra.mxu0 %v94
  %v232 = vpop.f32.mrf.mxu0
  %v233 = vadd.f32 0.0, %v232
  %234 = vmatmul.f32.gmra.mxu0 %v97
  %v235 = vpop.f32.mrf.mxu0
  %v236 = vadd.f32 0.0, %v235
  %237 = vdwg.mxu0
  %238 = vst [vmem:[%s6] sm:$0xff] %v169
  %239 = vst [vmem:[%s6 + $0x8] sm:$0xff] %v198
  %240 = vst [vmem:[%s6 + $0x10] sm:$0xff] %v227
  %241 = vst [vmem:[%s6 + $0x18] sm:$0xff] %v172
  %242 = vst [vmem:[%s6 + $0x20] sm:$0xff] %v201
  %243 = vst [vmem:[%s6 + $0x28] sm:$0xff] %v230
  %244 = vst [vmem:[%s6 + $0x30] sm:$0xff] %v175
  %245 = vst [vmem:[%s6 + $0x38] sm:$0xff] %v204
  %246 = vst [vmem:[%s6 + $0x40] sm:$0xff] %v233
  %247 = vst [vmem:[%s6 + $0x48] sm:$0xff] %v178
  %248 = vst [vmem:[%s6 + $0x50] sm:$0xff] %v207
  %249 = vst [vmem:[%s6 + $0x58] sm:$0xff] %v236
  %v250 = vld [vmem:[%s4] sm:$0x7]
  %v251 = vld [vmem:[%s4 + $0x3] sm:$0x7]
  %v252 = vadd.f32 %v250, %v251
  %v253 = vld [vmem:[%s4 + $0x6] sm:$0x7]
  %v254 = vadd.f32 %v252, %v253
  %v255 = vld [vmem:[%s4 + $0x9] sm:$0x7]
  %v256 = vadd.f32 %v254, %v255
  %v257 = vmul.f32 %v256, 0.25
  %v258 = vmul.f32 %v257, %v257
  %vm259 = vcmask 256000
  %v260 = vsel %vm259, %v258, 0.0
  %261 = vadd.xlane.f32.xlu0 %v260
  %v262 = vpop.xlane.xlu0 %261
  %v263 = vrsqrt.pop %v262
  %v264 = vmul.f32 %v263, %v262
  %v265 = vmul.f32 %v264, %v263
  %v266 = vmul.f32 0.5, %v265
  %v267 = vsub.f32 1.5, %v266
  %v268 = vmul.f32 %v263, %v267
  %v269 = vmul.f32 %v262, %v268
  %vm270 = vcmp.eq.f32.partialorder %v262, inf
  %v271 = vsel %vm270, %v262, %v269
  %vm272 = vcmp.eq.f32.partialorder %v262, 0.0
  %v273 = vand.u32 %v262, 2147483648
  %v274 = vsel %vm272, %v273, %v271
  %v275 = vmax.f32 %v274, 1e-12
  %v276 = vrcp.pop %v275
  %v277 = vmul.f32 %v275, %v276
  %v278 = vsub.f32 1.0, %v277
  %v279 = vmul.f32 %v276, %v278
  %v280 = vadd.f32 %v276, %v279
  %vm281 = vweird.f32 %v275
  %vm282 = vweird.f32 %v276
  %vm283 = vmor %vm281, %vm282
  %v284 = vsel %vm283, %v276, %v280
  %v285 = vand.u32 2147483647, %v275
  %vm286 = vcmp.eq.f32.partialorder %v285, 8.507059e+37
  %v287 = vand.u32 %v275, 2147483648
  %v288 = vor.u32 1.1754944e-38, %v287
  %v289 = vsel %vm286, %v288, %v284
  %v290 = vmul.f32 %v257, %v289
  %291 = vst.msk [vmem:[%s7] sm:$0x7] %vm259, %v290
  // Predicated region
  $region22: #{devitnet_forward.1} parent=0 // pred_check
    _
  $region23: #{devitnet_forward.1} parent=0 // pred_check_branch
    %293 = sbr.rel (0) target = $region25
  $region24: #{devitnet_forward.1} parent=0 // pred_region
    _
  $region25: #{devitnet_forward.1} parent=0 // pred_fallthru
    _
  // Predicated region
  $region26: #{devitnet_forward.1} parent=0 // pred_check
    _
  $region27: #{devitnet_forward.1} parent=0 // pred_check_branch
    %295 = sbr.rel (0) target = $region29
  $region28: #{devitnet_forward.1} parent=0 // pred_region
    _
  $region29: #{devitnet_forward.1} parent=0 // pred_fallthru
    _
  // Predicated region
  $region30: #{devitnet_forward.1} parent=0 // pred_check
    _
  $region31: #{devitnet_forward.1} parent=0 // pred_check_branch
    %297 = sbr.rel (0) target = $region33
  $region32: #{devitnet_forward.1} parent=0 // pred_region
    _
  $region33: #{devitnet_forward.1} parent=0 // pred_fallthru
    _
  // Predicated region
  $region34: #{devitnet_forward.1} parent=0 // pred_check
    _
  $region35: #{devitnet_forward.1} parent=0 // pred_check_branch
    %299 = sbr.rel (0) target = $region37
  $region36: #{devitnet_forward.1} parent=0 // pred_region
    _
  $region37: #{devitnet_forward.1} parent=0 // pred_fallthru
    _
  // Predicated region
  $region38: #{devitnet_forward.1} parent=0 // pred_check
    _
  $region39: #{devitnet_forward.1} parent=0 // pred_check_branch
    %301 = sbr.rel (0) target = $region41
  $region40: #{devitnet_forward.1} parent=0 // pred_region
    _
  $region41: #{devitnet_forward.1} parent=0 // pred_fallthru
    _
  // Predicated region
  $region42: #{devitnet_forward.1} parent=0 // pred_check
    _
  $region43: #{devitnet_forward.1} parent=0 // pred_check_branch
    %303 = sbr.rel (0) target = $region45
  $region44: #{devitnet_forward.1} parent=0 // pred_region
    _
  $region45: #{devitnet_forward.1} parent=0 // pred_fallthru
    _

</llo_original>
